<compile_context>
chip_gen: v7x
topology: tpu7x:2x2x1
jax: 0.10.0
libtpu: 0.0.40
codegen_flags: <defaults>
</compile_context>

<pallas_src>
import functools

import jax
import jax.numpy as jnp
from jax.experimental import pallas as pl
from jax.experimental.pallas import tpu as pltpu

_LANE = 128


def _round_up(x: int, m: int) -> int:
    return ((x + m - 1) // m) * m


def _div_pos(x, d: int):
    """x // d for non-negative int32 x and positive python-constant d."""
    if d & (d - 1) == 0:                       # power of two -> shift
        return jnp.right_shift(x, d.bit_length() - 1)
    return jax.lax.div(x, jnp.int32(d))


def _mod_pos(x, d: int):
    """x % d for non-negative int32 x and positive python-constant d."""
    if d & (d - 1) == 0:                       # power of two -> mask
        return jnp.bitwise_and(x, d - 1)
    return jax.lax.rem(x, jnp.int32(d))


def _focal_level_kernel(tgt_ref, pred_ref, out_ref, *,
                        alpha, gamma, num_classes, hw, n_valid, tm):
    """One FPN level. Grid = (batch, row_blocks); accumulates into out_ref."""
    b = pl.program_id(0)
    j = pl.program_id(1)

    @pl.when(j == 0)
    def _init():
        out_ref[...] = jnp.zeros_like(out_ref)

    x = pred_ref[...].astype(jnp.float32)                    # (1, tm, 128)

    # Flat element offset inside this batch's slab of the level (NCHW order).
    sub = jax.lax.broadcasted_iota(jnp.int32, (1, tm, _LANE), 1)
    lane = jax.lax.broadcasted_iota(jnp.int32, (1, tm, _LANE), 2)
    flat = (j * tm + sub) * _LANE + lane
    # channel = flat // (H*W); class = channel % num_classes
    cls = _mod_pos(_div_pos(flat, hw), num_classes)

    t = tgt_ref[b]                                           # SMEM scalar
    y = cls == t
    yf = y.astype(jnp.float32)

    # Shared exp(-|x|) between the numerically-stable sigmoid and BCE.
    e = jnp.exp(-jnp.abs(x))
    inv = 1.0 / (1.0 + e)
    sig = jnp.where(x >= 0, inv, e * inv)                    # sigmoid(x)

    pt = jnp.where(y, 1.0 - sig, sig)
    pt_pow = pt * pt if gamma == 2.0 else pt ** gamma        # gamma==2 fast path
    focal_w = jnp.where(y, alpha, 1.0 - alpha) * pt_pow

    # binary_cross_entropy_with_logits, reduction='none'
    bce = jnp.maximum(x, 0.0) - x * yf + jnp.log1p(e)
    loss = jnp.where(flat < n_valid, bce * focal_w, 0.0)     # mask pad rows

    out_ref[...] += loss                                      # resident block


def _focal_level_partial(p, tgt_i32, alpha, gamma, tile_rows):
    """Returns (partial-sum array, element count) for one NCHW level."""
    B = p.shape[0]
    num_classes = p.shape[1] // 9
    hw = p.shape[2] * p.shape[3]
    m = 9 * num_classes * hw                  # elements per batch in this level

    rows = _round_up(m, _LANE) // _LANE
    tm = min(tile_rows, _round_up(rows, 8))
    rows_pad = _round_up(rows, tm)
    m_pad = rows_pad * _LANE

    flat = p.reshape(B, m)                    # free: contiguous NCHW view
    if m_pad != m:
        flat = jnp.pad(flat, ((0, 0), (0, m_pad - m)))
    x3 = flat.reshape(B, rows_pad, _LANE)     # lane-dense 3-D view

    n_blocks = rows_pad // tm
    kernel = functools.partial(
        _focal_level_kernel,
        alpha=float(alpha), gamma=float(gamma),
        num_classes=num_classes, hw=hw, n_valid=m, tm=tm)

    partial = pl.pallas_call(
        kernel,
        out_shape=jax.ShapeDtypeStruct((B, tm, _LANE), jnp.float32),
        grid_spec=pltpu.PrefetchScalarGridSpec(
            num_scalar_prefetch=1,
            grid=(B, n_blocks),
            in_specs=[pl.BlockSpec((1, tm, _LANE), lambda b, j, tgt: (b, j, 0))],
            out_specs=pl.BlockSpec((1, tm, _LANE), lambda b, j, tgt: (b, 0, 0)),
        ),
        compiler_params=pltpu.CompilerParams(
            dimension_semantics=("parallel", "arbitrary")),
    )(tgt_i32, x3)

    return jnp.sum(partial), B * m


def focal_loss_pallas(preds, target, alpha=0.25, gamma=2.0, tile_rows=2048):
    """preds: list of (B, 9*C, H, W) arrays (NCHW). target: (B, 1) int class ids."""
    # TODO(synk): only K == 1 (a single class index per sample) is supported.
    assert target.ndim == 2 and target.shape[1] == 1
    tgt_i32 = target.reshape(-1).astype(jnp.int32)

    total = jnp.float32(0.0)
    count = 0
    for p in preds:
        s, c = _focal_level_partial(p, tgt_i32, alpha, gamma, tile_rows)
        total = total + s
        count += c
    return total / jnp.float32(count)


def _focal_loss_reference(preds, target, alpha=0.25, gamma=2.0):
    """Pure-JAX reference mirroring the PyTorch forward (for verification)."""
    num_classes = preds[0].shape[1] // 9
    reshaped = []
    for p in preds:
        B, _, H, W = p.shape
        p = p.reshape(B, 9, num_classes, H * W)
        p = jnp.transpose(p, (0, 1, 3, 2))
        reshaped.append(p)
    pred = jnp.concatenate(reshaped, axis=2)
    B, A, L, C = pred.shape
    tgt = jnp.broadcast_to(target.reshape(B, 1, 1, 1), (B, A, L, 1))
    one_hot = (jnp.arange(C)[None, None, None, :] == tgt).astype(pred.dtype)
    sig = jax.nn.sigmoid(pred)
    pt = (1 - sig) * one_hot + sig * (1 - one_hot)
    fw = (alpha * one_hot + (1 - alpha) * (1 - one_hot)) * pt ** gamma
    bce = jnp.maximum(pred, 0) - pred * one_hot + jnp.log1p(jnp.exp(-jnp.abs(pred)))
    return jnp.mean(bce * fw)


if __name__ == "__main__":
    key = jax.random.PRNGKey(0)
    k1, k2, k3 = jax.random.split(key, 3)

    batch, num_classes = 2, 4
    # two FPN levels, NCHW with channels = 9 * num_classes
    p0 = jax.random.normal(k1, (batch, 9 * num_classes, 16, 16), jnp.float32)
    p1 = jax.random.normal(k2, (batch, 9 * num_classes, 8, 8), jnp.float32)
    target = jax.random.randint(k3, (batch, 1), 0, num_classes, jnp.int32)

    loss = focal_loss_pallas([p0, p1], target)
    loss = jax.block_until_ready(loss)

    ref = _focal_loss_reference([p0, p1], target)
    assert jnp.allclose(loss, ref, rtol=1e-4, atol=1e-6), (loss, ref)

    print("KERNEL_OK")
</pallas_src>

<mosaic_0001>
module attributes {stable_mosaic.version = 11 : i64} {
  func.func @_focal_level_kernel(%arg0: i32, %arg1: i32, %arg2: memref<2xi32, #tpu.memory_space<smem>>, %arg3: memref<1x72x128xf32, #tpu.memory_space<vmem>>, %arg4: memref<1x72x128xf32, #tpu.memory_space<vmem>>) attributes {dimension_semantics = [#tpu.dimension_semantics<parallel>, #tpu.dimension_semantics<arbitrary>], iteration_bounds = array<i64: 2, 1>, scalar_prefetch = 1 : i64, scratch_operands = 0 : i64, tpu.core_type = #tpu.core_type<tc>, window_params = [{transform_indices = @transform_0, window_bounds = array<i64: 1, 72, 128>}, {transform_indices = @transform_1, window_bounds = array<i64: 1, 72, 128>}]} {
    %c0_i32 = arith.constant 0 : i32
    %0 = arith.cmpi eq, %arg1, %c0_i32 : i32
    %1 = arith.extui %0 : i1 to i32
    %c0_i32_0 = arith.constant 0 : i32
    %2 = arith.cmpi ne, %1, %c0_i32_0 : i32
    scf.if %2 {
      %cst_17 = arith.constant 0.000000e+00 : f32
      %56 = vector.broadcast %cst_17 : f32 to vector<1x72x128xf32>
      %c0_18 = arith.constant 0 : index
      %c0_19 = arith.constant 0 : index
      %c0_20 = arith.constant 0 : index
      %57 = vector.load %arg4[%c0_18, %c0_19, %c0_20] : memref<1x72x128xf32, #tpu.memory_space<vmem>>, vector<1x72x128xf32>
      tpu.vector_store %arg4[%c0_18, %c0_19, %c0_20], %56 {strides = array<i32>} : memref<1x72x128xf32, #tpu.memory_space<vmem>>, vector<1x72x128xf32>,
    } else {
    }
    %c0 = arith.constant 0 : index
    %c0_1 = arith.constant 0 : index
    %c0_2 = arith.constant 0 : index
    %3 = vector.load %arg3[%c0, %c0_1, %c0_2] : memref<1x72x128xf32, #tpu.memory_space<vmem>>, vector<1x72x128xf32>
    %4 = tpu.iota {dimensions = array<i32: 1>} : vector<1x72x128xi32>
    %5 = tpu.iota {dimensions = array<i32: 2>} : vector<1x72x128xi32>
    %c72_i32 = arith.constant 72 : i32
    %6 = arith.muli %arg1, %c72_i32 : i32
    %7 = vector.broadcast %6 : i32 to vector<1x72x128xi32>
    %8 = arith.addi %7, %4 : vector<1x72x128xi32>
    %c128_i32 = arith.constant 128 : i32
    %9 = vector.broadcast %c128_i32 : i32 to vector<1x72x128xi32>
    %10 = arith.muli %8, %9 : vector<1x72x128xi32>
    %11 = arith.addi %10, %5 : vector<1x72x128xi32>
    %c8_i32 = arith.constant 8 : i32
    %12 = vector.broadcast %c8_i32 : i32 to vector<1x72x128xi32>
    %13 = arith.shrsi %11, %12 : vector<1x72x128xi32>
    %c3_i32 = arith.constant 3 : i32
    %14 = vector.broadcast %c3_i32 : i32 to vector<1x72x128xi32>
    %15 = arith.andi %13, %14 : vector<1x72x128xi32>
    %16 = arith.index_cast %arg0 : i32 to index
    %17 = memref.load %arg2[%16] : memref<2xi32, #tpu.memory_space<smem>>
    %18 = vector.broadcast %17 : i32 to vector<1x72x128xi32>
    %19 = arith.cmpi eq, %15, %18 : vector<1x72x128xi32>
    %20 = arith.extui %19 : vector<1x72x128xi1> to vector<1x72x128xi32>
    %21 = arith.sitofp %20 : vector<1x72x128xi32> to vector<1x72x128xf32>
    %22 = math.absf %3 : vector<1x72x128xf32>
    %cst = arith.constant 0.000000e+00 : f32
    %23 = vector.broadcast %cst : f32 to vector<1x72x128xf32>
    %24 = arith.subf %23, %22 : vector<1x72x128xf32>
    %25 = math.exp %24 : vector<1x72x128xf32>
    %cst_3 = arith.constant 1.000000e+00 : f32
    %26 = vector.broadcast %cst_3 : f32 to vector<1x72x128xf32>
    %27 = arith.addf %26, %25 : vector<1x72x128xf32>
    %cst_4 = arith.constant 1.000000e+00 : f32
    %28 = vector.broadcast %cst_4 : f32 to vector<1x72x128xf32>
    %29 = arith.divf %28, %27 : vector<1x72x128xf32>
    %cst_5 = arith.constant 0.000000e+00 : f32
    %30 = vector.broadcast %cst_5 : f32 to vector<1x72x128xf32>
    %31 = arith.cmpf oge, %3, %30 : vector<1x72x128xf32>
    %32 = arith.mulf %25, %29 : vector<1x72x128xf32>
    %33 = arith.select %31, %29, %32 : vector<1x72x128xi1>, vector<1x72x128xf32>
    %cst_6 = arith.constant 1.000000e+00 : f32
    %34 = vector.broadcast %cst_6 : f32 to vector<1x72x128xf32>
    %35 = arith.subf %34, %33 : vector<1x72x128xf32>
    %36 = arith.select %19, %35, %33 : vector<1x72x128xi1>, vector<1x72x128xf32>
    %37 = arith.mulf %36, %36 : vector<1x72x128xf32>
    %cst_7 = arith.constant 2.500000e-01 : f32
    %cst_8 = arith.constant 7.500000e-01 : f32
    %38 = vector.broadcast %cst_7 : f32 to vector<1x72x128xf32>
    %39 = vector.broadcast %cst_8 : f32 to vector<1x72x128xf32>
    %40 = arith.select %19, %38, %39 : vector<1x72x128xi1>, vector<1x72x128xf32>
    %41 = arith.mulf %40, %37 : vector<1x72x128xf32>
    %cst_9 = arith.constant 0.000000e+00 : f32
    %42 = vector.broadcast %cst_9 : f32 to vector<1x72x128xf32>
    %43 = arith.maximumf %3, %42 : vector<1x72x128xf32>
    %44 = arith.mulf %3, %21 : vector<1x72x128xf32>
    %45 = arith.subf %43, %44 : vector<1x72x128xf32>
    %46 = math.log1p %25 : vector<1x72x128xf32>
    %47 = arith.addf %45, %46 : vector<1x72x128xf32>
    %c9216_i32 = arith.constant 9216 : i32
    %48 = vector.broadcast %c9216_i32 : i32 to vector<1x72x128xi32>
    %49 = arith.cmpi slt, %11, %48 : vector<1x72x128xi32>
    %50 = arith.mulf %47, %41 : vector<1x72x128xf32>
    %cst_10 = arith.constant 0.000000e+00 : f32
    %51 = vector.broadcast %cst_10 : f32 to vector<1x72x128xf32>
    %52 = arith.select %49, %50, %51 : vector<1x72x128xi1>, vector<1x72x128xf32>
    %c0_11 = arith.constant 0 : index
    %c0_12 = arith.constant 0 : index
    %c0_13 = arith.constant 0 : index
    %53 = vector.load %arg4[%c0_11, %c0_12, %c0_13] : memref<1x72x128xf32, #tpu.memory_space<vmem>>, vector<1x72x128xf32>
    %54 = arith.addf %53, %52 : vector<1x72x128xf32>
    %c0_14 = arith.constant 0 : index
    %c0_15 = arith.constant 0 : index
    %c0_16 = arith.constant 0 : index
    %55 = vector.load %arg4[%c0_14, %c0_15, %c0_16] : memref<1x72x128xf32, #tpu.memory_space<vmem>>, vector<1x72x128xf32>
    tpu.vector_store %arg4[%c0_14, %c0_15, %c0_16], %54 {strides = array<i32>} : memref<1x72x128xf32, #tpu.memory_space<vmem>>, vector<1x72x128xf32>,
    return
  }
  func.func @transform_0(%arg0: i32, %arg1: i32, %arg2: memref<2xi32, #tpu.memory_space<smem>>) -> (i32, i32, i32) {
    %c0_i32 = arith.constant 0 : i32
    %c0_i32_0 = arith.constant 0 : i32
    return %arg0, %arg1, %c0_i32 : i32, i32, i32
  }
  func.func @transform_1(%arg0: i32, %arg1: i32, %arg2: memref<2xi32, #tpu.memory_space<smem>>) -> (i32, i32, i32) {
    %c0_i32 = arith.constant 0 : i32
    %c0_i32_0 = arith.constant 0 : i32
    %c0_i32_1 = arith.constant 0 : i32
    return %arg0, %c0_i32, %c0_i32_0 : i32, i32, i32
  }
}

</mosaic_0001>

<llo_original>
// kernel: tpu_custom_call.1
$region0: #{tpu_custom_call.1}
  #allocation0 [shape = 'u32[]', space=smem, size = 0x4, offset = 0x4, fixed_abs, tag = 'smem constant byte address 0x4 - core index']
  #allocation1 [shape = 'u32[144,128]{1,0:T(1,128)}', space=vmem, size = 0x12000, scoped, tag = 'internal scratch']
  #allocation2 [shape = 's32[1]{0}', space=sflag, size = 0x4, scoped, tag = 'scoped memory for tpu_custom_call.1']
  #allocation3 [shape = 'u8[512]{0}', space=smem, size = 0x200, scoped, tag = 'prefetched SMEM operand 0']
  %s0 = inlined_call_operand.hbm [shape: s32[2], index: 0, kind: input, shape index: {}]
  %s1 = inlined_call_operand.hbm [shape: f32[2,72,128], index: 1, kind: input, shape index: {}]
  %s2 = inlined_call_operand.hbm [shape: f32[2,72,128], index: 2, kind: output, shape index: {}]
  %s3 = sld [smem:[#allocation0]]
  $region45: #{tpu_custom_call.1} parent=0
    _
  %s5 = ssub.s32 1, %s3
  %s6 = scalar_select 0, %s5, %s3
  %8 = dma.hbm_to_smem %s0, 16, [#allocation3], [#allocation2]
  %9 = dma.done [#allocation2], 16
  %10 = sfence
  $region1: #{tpu_custom_call.1} parent=0
    #allocation4 [shape = 'u8[73728]{0}', space=vmem, size = 0x12000, scoped, tag = 'input window, operand 1']
    #allocation5 [shape = 's32[2]{0}', space=sflag, size = 0x8, scoped, tag = 'scoped memory for tpu_custom_call.1']
    #allocation6 [shape = 's32[2]{0}', space=sflag, size = 0x8, scoped, tag = 'scoped memory for tpu_custom_call.1']
    #allocation7 [shape = 'u8[73728]{0}', space=vmem, size = 0x12000, scoped, tag = 'output window, operand 0']
    %11 = vsyncpa [#allocation5], 0
    %s12 = scalar_lea.sflag [#allocation5], 1
    %13 = vsyncpa %s12, 0
    %14 = vsyncpa [#allocation6], 0
    %s15 = scalar_lea.sflag [#allocation6], 1
    %16 = vsyncpa %s15, 0
    loop: start=0, step=1, limit=4
    $region2: #{tpu_custom_call.1} parent=1 // loop_pre_header
      _
    $region3: #{tpu_custom_call.1} parent=1 // loop_header
      %s18 = sphi 0, %s22
      %p19 = scmp.ge.s32.totalorder %s18, 4
      %s25 = sphi 0, %s37
      %s26 = sphi 0, %s33
      %s27 = sphi 0, %s25
      %s28 = sphi 0, %s26
      %s29 = sphi 0, %s27
      %s30 = sphi 0, %s28
      %s42 = sphi 0, %s44
      %s45 = sphi 0, %s42
      %s46 = sphi 0, %s45
      %s62 = sphi 0, %s46
      %s68 = sphi 0, %s70
      %s71 = sphi 0, %s68
      %s72 = sphi 0, %s71
      %s88 = sphi 0, %s72
    $region4: #{tpu_custom_call.1} parent=1 // loop_header_branch
      %21 = sbr.rel (%p19) target = $region8
    $region5: #{tpu_custom_call.1} parent=1 // loop_body
      %s23 = ssub.s32 %s18, 1
      %s24 = ssub.s32 %s18, 2
      %s31 = sadd.s32 1, %s26
      %p32 = scmp.ge.s32.totalorder %s31, 1
      %s33 = scalar_select %p32, 0, %s31
      %s34 = sadd.s32 1, %s25
      %s35 = scalar_select %p32, %s34, %s25
      %p36 = scmp.ge.s32.totalorder %s35, 2
      %s37 = scalar_select %p36, 0, %s35
      %s38 = ssub.s32 %s25, %s37
      %s39 = ssub.s32 %s26, %s33
      %s40 = sor.u32 %s38, %s39
      %p41 = scmp.eq.s32.totalorder %s40, 0
      %s43 = sadd.s32 %s42, 1
      %s44 = scalar_select %p41, %s42, %s43
      %p47 = pneg %p41
      %p48 = scmp.eq.s32.totalorder %s18, 1
      %p49 = por %p47, %p48
      %p50 = scmp.ne.s32.totalorder %s42, %s45
      %p51 = scmp.eq.s32.totalorder %s18, 0
      %p52 = por %p50, %p51
      %p53 = scmp.ne.s32.totalorder %s42, %s45
      %p54 = scmp.eq.s32.totalorder %s23, 1
      %p55 = por %p53, %p54
      %p56 = scmp.ne.s32.totalorder %s45, %s46
      %p57 = scmp.eq.s32.totalorder %s23, 0
      %p58 = por %p56, %p57
      %p59 = scmp.ne.s32.totalorder %s45, %s46
      %p60 = scmp.eq.s32.totalorder %s24, 1
      %p61 = por %p59, %p60
      %p63 = scmp.ne.s32.totalorder %s46, %s62
      %p64 = scmp.eq.s32.totalorder %s24, 0
      %p65 = por %p63, %p64
      %s66 = ssub.s32 %s25, %s37
      %p67 = scmp.eq.s32.totalorder %s66, 0
      %s69 = sadd.s32 %s68, 1
      %s70 = scalar_select %p67, %s68, %s69
      %p73 = pneg %p67
      %p74 = scmp.eq.s32.totalorder %s18, 1
      %p75 = por %p73, %p74
      %p76 = scmp.ne.s32.totalorder %s68, %s71
      %p77 = scmp.eq.s32.totalorder %s18, 0
      %p78 = por %p76, %p77
      %p79 = scmp.ne.s32.totalorder %s68, %s71
      %p80 = scmp.eq.s32.totalorder %s23, 1
      %p81 = por %p79, %p80
      %p82 = scmp.ne.s32.totalorder %s71, %s72
      %p83 = scmp.eq.s32.totalorder %s23, 0
      %p84 = por %p82, %p83
      %p85 = scmp.ne.s32.totalorder %s71, %s72
      %p86 = scmp.eq.s32.totalorder %s24, 1
      %p87 = por %p85, %p86
      %p89 = scmp.ne.s32.totalorder %s72, %s88
      %p90 = scmp.eq.s32.totalorder %s24, 0
      %p91 = por %p89, %p90
      %p92 = scmp.le.s32.totalorder 1, %s18
      %p93 = scmp.lt.s32.totalorder %s18, 3
      %p94 = pnand %p92, %p93
      %p95 = pneg %p94
      // Predicated region
      $region9: #{tpu_custom_call.1} parent=5 // pred_check
        _
      $region10: #{tpu_custom_call.1} parent=5 // pred_check_branch
        %97 = sbr.rel (%p94) target = $region12
      $region11: #{tpu_custom_call.1} parent=5 // pred_region
        %s98 = ssub.s32 %s18, 1
      $region12: #{tpu_custom_call.1} parent=5 // pred_fallthru
        _
      %p99 = scmp.lt.s32.totalorder %s18, 2
      // Predicated region
      $region13: #{tpu_custom_call.1} parent=5 // pred_check
        %p100 = pneg %p99
      $region14: #{tpu_custom_call.1} parent=5 // pred_check_branch
        %102 = sbr.rel (%p100) target = $region16
      $region15: #{tpu_custom_call.1} parent=5 // pred_region
        // Predicated region
        $region17: #{tpu_custom_call.1} parent=15 // pred_check
          %p103 = pneg %p52
        $region18: #{tpu_custom_call.1} parent=15 // pred_check_branch
          %105 = sbr.rel (%p103) target = $region20
        $region19: #{tpu_custom_call.1} parent=15 // pred_region
          %s106 = sand.u32 %s42, 1
          %s107 = scalar_lea.sflag [#allocation5], %s106
          %s108 = sand.u32 %s42, 1
          %s109 = smul.addr %s108, 72
          %s110 = scalar_lea.vmem [#allocation4], %s109
          %s111 = smul.u32 9, %s26
          %s113 = ssub.s32 1152, 1152
          %114 = vsyncadd %s107, %s113
          %s115 = smul.addr %s25, 9
          %s116 = sadd.s32 %s111, %s115
          %s117 = smul.addr %s116, 128
          %s118 = scalar_lea.hbm %s1, %s117
          %s119 = sshll.u32 %s110, 4
          %s120 = int_to_ptr.vmem [resolvable:$true] %s119
          %125 = dma.hbm_to_vmem [thread:$0]  %s118, 1152, %s120, %s107, 128, 128, 8
        $region20: #{tpu_custom_call.1} parent=15 // pred_fallthru
          _
      $region16: #{tpu_custom_call.1} parent=5 // pred_fallthru
        _
      %p126 = scmp.le.s32.totalorder 1, %s18
      %p127 = scmp.lt.s32.totalorder %s18, 3
      %p128 = pnand %p126, %p127
      %p129 = pneg %p128
      // Predicated region
      $region21: #{tpu_custom_call.1} parent=5 // pred_check
        _
      $region22: #{tpu_custom_call.1} parent=5 // pred_check_branch
        %131 = sbr.rel (%p128) target = $region24
      $region23: #{tpu_custom_call.1} parent=5 // pred_region
        %s132 = ssub.s32 %s18, 1
        %s133 = sand.u32 %s45, 1
        %s134 = scalar_lea.sflag [#allocation5], %s133
        %s135 = sand.u32 %s45, 1
        %s136 = smul.addr %s135, 72
        %s137 = scalar_lea.vmem [#allocation4], %s136
        // Predicated region
        $region25: #{tpu_custom_call.1} parent=23 // pred_check
          %p138 = pneg %p58
        $region26: #{tpu_custom_call.1} parent=23 // pred_check_branch
          %140 = sbr.rel (%p138) target = $region28
        $region27: #{tpu_custom_call.1} parent=23 // pred_region
          %141 = dma.done %s134, 1152
        $region28: #{tpu_custom_call.1} parent=23 // pred_fallthru
          _
        %s142 = sand.u32 %s45, 1
        %s143 = scalar_lea.sflag [#allocation5], %s142
        %s144 = sand.u32 %s45, 1
        %s145 = smul.addr %s144, 72
        %s146 = scalar_lea.vmem [#allocation4], %s145
        %p147 = pneg %p58
        %p148 = pneg %p55
        %p149 = pneg %p84
        %p150 = pneg %p81
        %s151 = sand.u32 %s71, 1
        %s152 = scalar_lea.sflag [#allocation6], %s151
        %s153 = sand.u32 %s71, 1
        %s154 = smul.addr %s153, 72
        %s155 = scalar_lea.vmem [#allocation7], %s154
        %s156 = smul.u32 9, %s28
        %p157 = scmp.eq.s32.totalorder %s28, 0
        // Predicated region
        $region29: #{tpu_custom_call.1} parent=23 // pred_check
          %p158 = pneg %p157
        $region30: #{tpu_custom_call.1} parent=23 // pred_check_branch
          %160 = sbr.rel (%p158) target = $region32
        $region31: #{tpu_custom_call.1} parent=23 // pred_region
          %161 = vst [vmem:[%s155] sm:$0xff] 0.0
          %162 = vst [vmem:[%s155 + $0x8] sm:$0xff] 0.0
          %163 = vst [vmem:[%s155 + $0x10] sm:$0xff] 0.0
          %164 = vst [vmem:[%s155 + $0x18] sm:$0xff] 0.0
          %165 = vst [vmem:[%s155 + $0x20] sm:$0xff] 0.0
          %166 = vst [vmem:[%s155 + $0x28] sm:$0xff] 0.0
          %167 = vst [vmem:[%s155 + $0x30] sm:$0xff] 0.0
          %168 = vst [vmem:[%s155 + $0x38] sm:$0xff] 0.0
          %169 = vst [vmem:[%s155 + $0x40] sm:$0xff] 0.0
        $region32: #{tpu_custom_call.1} parent=23 // pred_fallthru
          _
        %v170 = vld [vmem:[%s137] sm:$0xff]
        %v171 = vld [vmem:[%s137 + $0x8] sm:$0xff]
        %v172 = vld [vmem:[%s137 + $0x10] sm:$0xff]
        %v173 = vld [vmem:[%s137 + $0x18] sm:$0xff]
        %v174 = vld [vmem:[%s137 + $0x20] sm:$0xff]
        %v175 = vld [vmem:[%s137 + $0x28] sm:$0xff]
        %v176 = vld [vmem:[%s137 + $0x30] sm:$0xff]
        %v177 = vld [vmem:[%s137 + $0x38] sm:$0xff]
        %v178 = vld [vmem:[%s137 + $0x40] sm:$0xff]
        %v179 = vlaneseq
        %v180 = vshrl.u32 %v179, 7
        %v181 = vadd.s32 %v180, 8
        %v182 = vadd.s32 %v180, 16
        %v183 = vadd.s32 %v180, 24
        %v184 = vadd.s32 %v180, 32
        %v185 = vadd.s32 %v180, 40
        %v186 = vadd.s32 %v180, 48
        %v187 = vadd.s32 %v180, 56
        %v188 = vadd.s32 %v180, 64
        %v189 = vlaneseq
        %v190 = vand.u32 %v189, 127
        %s191 = smul.u32 %s28, 72
        %v192 = vstv %s191
        %v193 = vadd.s32 %v192, %v180
        %v194 = vadd.s32 %v192, %v181
        %v195 = vadd.s32 %v192, %v182
        %v196 = vadd.s32 %v192, %v183
        %v197 = vadd.s32 %v192, %v184
        %v198 = vadd.s32 %v192, %v185
        %v199 = vadd.s32 %v192, %v186
        %v200 = vadd.s32 %v192, %v187
        %v201 = vadd.s32 %v192, %v188
        %v202 = vmul.u32 %v193, 128
        %v203 = vmul.u32 %v194, 128
        %v204 = vmul.u32 %v195, 128
        %v205 = vmul.u32 %v196, 128
        %v206 = vmul.u32 %v197, 128
        %v207 = vmul.u32 %v198, 128
        %v208 = vmul.u32 %v199, 128
        %v209 = vmul.u32 %v200, 128
        %v210 = vmul.u32 %v201, 128
        %v211 = vadd.s32 %v202, %v190
        %v212 = vadd.s32 %v203, %v190
        %v213 = vadd.s32 %v204, %v190
        %v214 = vadd.s32 %v205, %v190
        %v215 = vadd.s32 %v206, %v190
        %v216 = vadd.s32 %v207, %v190
        %v217 = vadd.s32 %v208, %v190
        %v218 = vadd.s32 %v209, %v190
        %v219 = vadd.s32 %v210, %v190
        %v220 = vshra.s32 %v211, 8
        %v221 = vshra.s32 %v212, 8
        %v222 = vshra.s32 %v213, 8
        %v223 = vshra.s32 %v214, 8
        %v224 = vshra.s32 %v215, 8
        %v225 = vshra.s32 %v216, 8
        %v226 = vshra.s32 %v217, 8
        %v227 = vshra.s32 %v218, 8
        %v228 = vshra.s32 %v219, 8
        %v229 = vand.u32 %v220, 3
        %v230 = vand.u32 %v221, 3
        %v231 = vand.u32 %v222, 3
        %v232 = vand.u32 %v223, 3
        %v233 = vand.u32 %v224, 3
        %v234 = vand.u32 %v225, 3
        %v235 = vand.u32 %v226, 3
        %v236 = vand.u32 %v227, 3
        %v237 = vand.u32 %v228, 3
        %s238 = sld [smem:[#allocation3 + %s27]]
        %v239 = vstv %s238
        %vm240 = vcmp.eq.s32.totalorder %v229, %v239
        %vm241 = vcmp.eq.s32.totalorder %v230, %v239
        %vm242 = vcmp.eq.s32.totalorder %v231, %v239
        %vm243 = vcmp.eq.s32.totalorder %v232, %v239
        %vm244 = vcmp.eq.s32.totalorder %v233, %v239
        %vm245 = vcmp.eq.s32.totalorder %v234, %v239
        %vm246 = vcmp.eq.s32.totalorder %v235, %v239
        %vm247 = vcmp.eq.s32.totalorder %v236, %v239
        %vm248 = vcmp.eq.s32.totalorder %v237, %v239
        %v249 = vsel %vm240, 1, 0
        %v250 = vsel %vm241, 1, 0
        %v251 = vsel %vm242, 1, 0
        %v252 = vsel %vm243, 1, 0
        %v253 = vsel %vm244, 1, 0
        %v254 = vsel %vm245, 1, 0
        %v255 = vsel %vm246, 1, 0
        %v256 = vsel %vm247, 1, 0
        %v257 = vsel %vm248, 1, 0
        %v258 = vcvt.s32.f32 %v249
        %v259 = vcvt.s32.f32 %v250
        %v260 = vcvt.s32.f32 %v251
        %v261 = vcvt.s32.f32 %v252
        %v262 = vcvt.s32.f32 %v253
        %v263 = vcvt.s32.f32 %v254
        %v264 = vcvt.s32.f32 %v255
        %v265 = vcvt.s32.f32 %v256
        %v266 = vcvt.s32.f32 %v257
        %v267 = vand.u32 2147483647, %v170
        %v268 = vand.u32 2147483647, %v171
        %v269 = vand.u32 2147483647, %v172
        %v270 = vand.u32 2147483647, %v173
        %v271 = vand.u32 2147483647, %v174
        %v272 = vand.u32 2147483647, %v175
        %v273 = vand.u32 2147483647, %v176
        %v274 = vand.u32 2147483647, %v177
        %v275 = vand.u32 2147483647, %v178
        %v276 = vsub.f32 0.0, %v267
        %v277 = vsub.f32 0.0, %v268
        %v278 = vsub.f32 0.0, %v269
        %v279 = vsub.f32 0.0, %v270
        %v280 = vsub.f32 0.0, %v271
        %v281 = vsub.f32 0.0, %v272
        %v282 = vsub.f32 0.0, %v273
        %v283 = vsub.f32 0.0, %v274
        %v284 = vsub.f32 0.0, %v275
        %v285 = vmul.f32 %v276, 1.442695
        %v286 = vpow.pop %v285
        %v287 = vmul.f32 %v277, 1.442695
        %v288 = vpow.pop %v287
        %v289 = vmul.f32 %v278, 1.442695
        %v290 = vpow.pop %v289
        %v291 = vmul.f32 %v279, 1.442695
        %v292 = vpow.pop %v291
        %v293 = vmul.f32 %v280, 1.442695
        %v294 = vpow.pop %v293
        %v295 = vmul.f32 %v281, 1.442695
        %v296 = vpow.pop %v295
        %v297 = vmul.f32 %v282, 1.442695
        %v298 = vpow.pop %v297
        %v299 = vmul.f32 %v283, 1.442695
        %v300 = vpow.pop %v299
        %v301 = vmul.f32 %v284, 1.442695
        %v302 = vpow.pop %v301
        %v303 = vadd.f32 %v286, 1.0
        %v304 = vadd.f32 %v288, 1.0
        %v305 = vadd.f32 %v290, 1.0
        %v306 = vadd.f32 %v292, 1.0
        %v307 = vadd.f32 %v294, 1.0
        %v308 = vadd.f32 %v296, 1.0
        %v309 = vadd.f32 %v298, 1.0
        %v310 = vadd.f32 %v300, 1.0
        %v311 = vadd.f32 %v302, 1.0
        %v312 = vrcp.pop %v303
        %v313 = vmul.f32 1.0, %v312
        %v314 = vrcp.pop %v304
        %v315 = vmul.f32 1.0, %v314
        %v316 = vrcp.pop %v305
        %v317 = vmul.f32 1.0, %v316
        %v318 = vrcp.pop %v306
        %v319 = vmul.f32 1.0, %v318
        %v320 = vrcp.pop %v307
        %v321 = vmul.f32 1.0, %v320
        %v322 = vrcp.pop %v308
        %v323 = vmul.f32 1.0, %v322
        %v324 = vrcp.pop %v309
        %v325 = vmul.f32 1.0, %v324
        %v326 = vrcp.pop %v310
        %v327 = vmul.f32 1.0, %v326
        %v328 = vrcp.pop %v311
        %v329 = vmul.f32 1.0, %v328
        %vm330 = vcmp.ge.f32.partialorder %v170, 0.0
        %vm331 = vcmp.ge.f32.partialorder %v171, 0.0
        %vm332 = vcmp.ge.f32.partialorder %v172, 0.0
        %vm333 = vcmp.ge.f32.partialorder %v173, 0.0
        %vm334 = vcmp.ge.f32.partialorder %v174, 0.0
        %vm335 = vcmp.ge.f32.partialorder %v175, 0.0
        %vm336 = vcmp.ge.f32.partialorder %v176, 0.0
        %vm337 = vcmp.ge.f32.partialorder %v177, 0.0
        %vm338 = vcmp.ge.f32.partialorder %v178, 0.0
        %v339 = vmul.f32 %v286, %v313
        %v340 = vmul.f32 %v288, %v315
        %v341 = vmul.f32 %v290, %v317
        %v342 = vmul.f32 %v292, %v319
        %v343 = vmul.f32 %v294, %v321
        %v344 = vmul.f32 %v296, %v323
        %v345 = vmul.f32 %v298, %v325
        %v346 = vmul.f32 %v300, %v327
        %v347 = vmul.f32 %v302, %v329
        %v348 = vsel %vm330, %v313, %v339
        %v349 = vsel %vm331, %v315, %v340
        %v350 = vsel %vm332, %v317, %v341
        %v351 = vsel %vm333, %v319, %v342
        %v352 = vsel %vm334, %v321, %v343
        %v353 = vsel %vm335, %v323, %v344
        %v354 = vsel %vm336, %v325, %v345
        %v355 = vsel %vm337, %v327, %v346
        %v356 = vsel %vm338, %v329, %v347
        %v357 = vsub.f32 1.0, %v348
        %v358 = vsub.f32 1.0, %v349
        %v359 = vsub.f32 1.0, %v350
        %v360 = vsub.f32 1.0, %v351
        %v361 = vsub.f32 1.0, %v352
        %v362 = vsub.f32 1.0, %v353
        %v363 = vsub.f32 1.0, %v354
        %v364 = vsub.f32 1.0, %v355
        %v365 = vsub.f32 1.0, %v356
        %v366 = vsel %vm240, %v357, %v348
        %v367 = vsel %vm241, %v358, %v349
        %v368 = vsel %vm242, %v359, %v350
        %v369 = vsel %vm243, %v360, %v351
        %v370 = vsel %vm244, %v361, %v352
        %v371 = vsel %vm245, %v362, %v353
        %v372 = vsel %vm246, %v363, %v354
        %v373 = vsel %vm247, %v364, %v355
        %v374 = vsel %vm248, %v365, %v356
        %v375 = vmul.f32 %v366, %v366
        %v376 = vmul.f32 %v367, %v367
        %v377 = vmul.f32 %v368, %v368
        %v378 = vmul.f32 %v369, %v369
        %v379 = vmul.f32 %v370, %v370
        %v380 = vmul.f32 %v371, %v371
        %v381 = vmul.f32 %v372, %v372
        %v382 = vmul.f32 %v373, %v373
        %v383 = vmul.f32 %v374, %v374
        %v384 = vsel %vm240, 0.25, 0.75
        %v385 = vsel %vm241, 0.25, 0.75
        %v386 = vsel %vm242, 0.25, 0.75
        %v387 = vsel %vm243, 0.25, 0.75
        %v388 = vsel %vm244, 0.25, 0.75
        %v389 = vsel %vm245, 0.25, 0.75
        %v390 = vsel %vm246, 0.25, 0.75
        %v391 = vsel %vm247, 0.25, 0.75
        %v392 = vsel %vm248, 0.25, 0.75
        %v393 = vmul.f32 %v384, %v375
        %v394 = vmul.f32 %v385, %v376
        %v395 = vmul.f32 %v386, %v377
        %v396 = vmul.f32 %v387, %v378
        %v397 = vmul.f32 %v388, %v379
        %v398 = vmul.f32 %v389, %v380
        %v399 = vmul.f32 %v390, %v381
        %v400 = vmul.f32 %v391, %v382
        %v401 = vmul.f32 %v392, %v383
        %v402 = vmax.f32 %v170, 0.0
        %v403 = vmax.f32 %v171, 0.0
        %v404 = vmax.f32 %v172, 0.0
        %v405 = vmax.f32 %v173, 0.0
        %v406 = vmax.f32 %v174, 0.0
        %v407 = vmax.f32 %v175, 0.0
        %v408 = vmax.f32 %v176, 0.0
        %v409 = vmax.f32 %v177, 0.0
        %v410 = vmax.f32 %v178, 0.0
        %v411 = vmul.f32 %v170, %v258
        %v412 = vmul.f32 %v171, %v259
        %v413 = vmul.f32 %v172, %v260
        %v414 = vmul.f32 %v173, %v261
        %v415 = vmul.f32 %v174, %v262
        %v416 = vmul.f32 %v175, %v263
        %v417 = vmul.f32 %v176, %v264
        %v418 = vmul.f32 %v177, %v265
        %v419 = vmul.f32 %v178, %v266
        %v420 = vsub.f32 %v402, %v411
        %v421 = vsub.f32 %v403, %v412
        %v422 = vsub.f32 %v404, %v413
        %v423 = vsub.f32 %v405, %v414
        %v424 = vsub.f32 %v406, %v415
        %v425 = vsub.f32 %v407, %v416
        %v426 = vsub.f32 %v408, %v417
        %v427 = vsub.f32 %v409, %v418
        %v428 = vsub.f32 %v410, %v419
        %v429 = vadd.f32 %v286, 1.0
        %v430 = vlog2.pop %v429
        %v431 = vmul.f32 %v430, 0.6931472
        %v432 = vmul.f32 -0.5, %v286
        %v433 = vadd.f32 %v432, 1.0
        %v434 = vmul.f32 %v433, %v286
        %v435 = vand.u32 2147483647, %v286
        %vm436 = vcmp.lt.f32.partialorder %v435, 0.0004427343
        %v437 = vsel %vm436, %v434, %v431
        %v438 = vadd.f32 %v288, 1.0
        %v439 = vlog2.pop %v438
        %v440 = vmul.f32 %v439, 0.6931472
        %v441 = vmul.f32 -0.5, %v288
        %v442 = vadd.f32 %v441, 1.0
        %v443 = vmul.f32 %v442, %v288
        %v444 = vand.u32 2147483647, %v288
        %vm445 = vcmp.lt.f32.partialorder %v444, 0.0004427343
        %v446 = vsel %vm445, %v443, %v440
        %v447 = vadd.f32 %v290, 1.0
        %v448 = vlog2.pop %v447
        %v449 = vmul.f32 %v448, 0.6931472
        %v450 = vmul.f32 -0.5, %v290
        %v451 = vadd.f32 %v450, 1.0
        %v452 = vmul.f32 %v451, %v290
        %v453 = vand.u32 2147483647, %v290
        %vm454 = vcmp.lt.f32.partialorder %v453, 0.0004427343
        %v455 = vsel %vm454, %v452, %v449
        %v456 = vadd.f32 %v292, 1.0
        %v457 = vlog2.pop %v456
        %v458 = vmul.f32 %v457, 0.6931472
        %v459 = vmul.f32 -0.5, %v292
        %v460 = vadd.f32 %v459, 1.0
        %v461 = vmul.f32 %v460, %v292
        %v462 = vand.u32 2147483647, %v292
        %vm463 = vcmp.lt.f32.partialorder %v462, 0.0004427343
        %v464 = vsel %vm463, %v461, %v458
        %v465 = vadd.f32 %v294, 1.0
        %v466 = vlog2.pop %v465
        %v467 = vmul.f32 %v466, 0.6931472
        %v468 = vmul.f32 -0.5, %v294
        %v469 = vadd.f32 %v468, 1.0
        %v470 = vmul.f32 %v469, %v294
        %v471 = vand.u32 2147483647, %v294
        %vm472 = vcmp.lt.f32.partialorder %v471, 0.0004427343
        %v473 = vsel %vm472, %v470, %v467
        %v474 = vadd.f32 %v296, 1.0
        %v475 = vlog2.pop %v474
        %v476 = vmul.f32 %v475, 0.6931472
        %v477 = vmul.f32 -0.5, %v296
        %v478 = vadd.f32 %v477, 1.0
        %v479 = vmul.f32 %v478, %v296
        %v480 = vand.u32 2147483647, %v296
        %vm481 = vcmp.lt.f32.partialorder %v480, 0.0004427343
        %v482 = vsel %vm481, %v479, %v476
        %v483 = vadd.f32 %v298, 1.0
        %v484 = vlog2.pop %v483
        %v485 = vmul.f32 %v484, 0.6931472
        %v486 = vmul.f32 -0.5, %v298
        %v487 = vadd.f32 %v486, 1.0
        %v488 = vmul.f32 %v487, %v298
        %v489 = vand.u32 2147483647, %v298
        %vm490 = vcmp.lt.f32.partialorder %v489, 0.0004427343
        %v491 = vsel %vm490, %v488, %v485
        %v492 = vadd.f32 %v300, 1.0
        %v493 = vlog2.pop %v492
        %v494 = vmul.f32 %v493, 0.6931472
        %v495 = vmul.f32 -0.5, %v300
        %v496 = vadd.f32 %v495, 1.0
        %v497 = vmul.f32 %v496, %v300
        %v498 = vand.u32 2147483647, %v300
        %vm499 = vcmp.lt.f32.partialorder %v498, 0.0004427343
        %v500 = vsel %vm499, %v497, %v494
        %v501 = vadd.f32 %v302, 1.0
        %v502 = vlog2.pop %v501
        %v503 = vmul.f32 %v502, 0.6931472
        %v504 = vmul.f32 -0.5, %v302
        %v505 = vadd.f32 %v504, 1.0
        %v506 = vmul.f32 %v505, %v302
        %v507 = vand.u32 2147483647, %v302
        %vm508 = vcmp.lt.f32.partialorder %v507, 0.0004427343
        %v509 = vsel %vm508, %v506, %v503
        %v510 = vadd.f32 %v420, %v437
        %v511 = vadd.f32 %v421, %v446
        %v512 = vadd.f32 %v422, %v455
        %v513 = vadd.f32 %v423, %v464
        %v514 = vadd.f32 %v424, %v473
        %v515 = vadd.f32 %v425, %v482
        %v516 = vadd.f32 %v426, %v491
        %v517 = vadd.f32 %v427, %v500
        %v518 = vadd.f32 %v428, %v509
        %vm519 = vcmp.lt.s32.totalorder %v211, 9216
        %vm520 = vcmp.lt.s32.totalorder %v212, 9216
        %vm521 = vcmp.lt.s32.totalorder %v213, 9216
        %vm522 = vcmp.lt.s32.totalorder %v214, 9216
        %vm523 = vcmp.lt.s32.totalorder %v215, 9216
        %vm524 = vcmp.lt.s32.totalorder %v216, 9216
        %vm525 = vcmp.lt.s32.totalorder %v217, 9216
        %vm526 = vcmp.lt.s32.totalorder %v218, 9216
        %vm527 = vcmp.lt.s32.totalorder %v219, 9216
        %v528 = vmul.f32 %v510, %v393
        %v529 = vmul.f32 %v511, %v394
        %v530 = vmul.f32 %v512, %v395
        %v531 = vmul.f32 %v513, %v396
        %v532 = vmul.f32 %v514, %v397
        %v533 = vmul.f32 %v515, %v398
        %v534 = vmul.f32 %v516, %v399
        %v535 = vmul.f32 %v517, %v400
        %v536 = vmul.f32 %v518, %v401
        %v537 = vsel %vm519, %v528, 0.0
        %v538 = vsel %vm520, %v529, 0.0
        %v539 = vsel %vm521, %v530, 0.0
        %v540 = vsel %vm522, %v531, 0.0
        %v541 = vsel %vm523, %v532, 0.0
        %v542 = vsel %vm524, %v533, 0.0
        %v543 = vsel %vm525, %v534, 0.0
        %v544 = vsel %vm526, %v535, 0.0
        %v545 = vsel %vm527, %v536, 0.0
        %v546 = vld [vmem:[%s155] sm:$0xff]
        %v547 = vld [vmem:[%s155 + $0x8] sm:$0xff]
        %v548 = vld [vmem:[%s155 + $0x10] sm:$0xff]
        %v549 = vld [vmem:[%s155 + $0x18] sm:$0xff]
        %v550 = vld [vmem:[%s155 + $0x20] sm:$0xff]
        %v551 = vld [vmem:[%s155 + $0x28] sm:$0xff]
        %v552 = vld [vmem:[%s155 + $0x30] sm:$0xff]
        %v553 = vld [vmem:[%s155 + $0x38] sm:$0xff]
        %v554 = vld [vmem:[%s155 + $0x40] sm:$0xff]
        %v555 = vadd.f32 %v546, %v537
        %v556 = vadd.f32 %v547, %v538
        %v557 = vadd.f32 %v548, %v539
        %v558 = vadd.f32 %v549, %v540
        %v559 = vadd.f32 %v550, %v541
        %v560 = vadd.f32 %v551, %v542
        %v561 = vadd.f32 %v552, %v543
        %v562 = vadd.f32 %v553, %v544
        %v563 = vadd.f32 %v554, %v545
        %564 = vst [vmem:[%s155] sm:$0xff] %v555
        %565 = vst [vmem:[%s155 + $0x8] sm:$0xff] %v556
        %566 = vst [vmem:[%s155 + $0x10] sm:$0xff] %v557
        %567 = vst [vmem:[%s155 + $0x18] sm:$0xff] %v558
        %568 = vst [vmem:[%s155 + $0x20] sm:$0xff] %v559
        %569 = vst [vmem:[%s155 + $0x28] sm:$0xff] %v560
        %570 = vst [vmem:[%s155 + $0x30] sm:$0xff] %v561
        %571 = vst [vmem:[%s155 + $0x38] sm:$0xff] %v562
        %572 = vst [vmem:[%s155 + $0x40] sm:$0xff] %v563
        %s573 = sand.u32 %s71, 1
        %s574 = scalar_lea.sflag [#allocation6], %s573
        %s575 = sand.u32 %s71, 1
        %s576 = smul.addr %s575, 72
        %s577 = scalar_lea.vmem [#allocation7], %s576
        // Predicated region
        $region33: #{tpu_custom_call.1} parent=23 // pred_check
          %p578 = pneg %p81
        $region34: #{tpu_custom_call.1} parent=23 // pred_check_branch
          %580 = sbr.rel (%p578) target = $region36
        $region35: #{tpu_custom_call.1} parent=23 // pred_region
          %s582 = ssub.s32 1152, 1152
          %583 = vsyncadd %s574, %s582
          %s584 = smul.addr %s27, 9
          %s585 = smul.addr %s584, 128
          %s586 = scalar_lea.hbm %s2, %s585
          %s587 = sshll.u32 %s577, 4
          %s588 = int_to_ptr.vmem [resolvable:$true] %s587
          %593 = dma.vmem_to_hbm [thread:$0]  %s588, 1152, %s586, %s574, 128, 128, 8
        $region36: #{tpu_custom_call.1} parent=23 // pred_fallthru
          _
      $region24: #{tpu_custom_call.1} parent=5 // pred_fallthru
        _
      %p594 = scmp.le.s32.totalorder 2, %s18
      // Predicated region
      $region37: #{tpu_custom_call.1} parent=5 // pred_check
        %p595 = pneg %p594
      $region38: #{tpu_custom_call.1} parent=5 // pred_check_branch
        %597 = sbr.rel (%p595) target = $region40
      $region39: #{tpu_custom_call.1} parent=5 // pred_region
        %s598 = ssub.s32 %s18, 2
        // Predicated region
        $region41: #{tpu_custom_call.1} parent=39 // pred_check
          %p599 = pneg %p87
        $region42: #{tpu_custom_call.1} parent=39 // pred_check_branch
          %601 = sbr.rel (%p599) target = $region44
        $region43: #{tpu_custom_call.1} parent=39 // pred_region
          %s602 = sand.u32 %s72, 1
          %s603 = scalar_lea.sflag [#allocation6], %s602
          %s604 = sand.u32 %s72, 1
          %s605 = smul.addr %s604, 72
          %s606 = scalar_lea.vmem [#allocation7], %s605
          %607 = dma.done %s603, 1152
        $region44: #{tpu_custom_call.1} parent=39 // pred_fallthru
          _
      $region40: #{tpu_custom_call.1} parent=5 // pred_fallthru
        _
    $region6: #{tpu_custom_call.1} parent=1 // loop_footer
      %s22 = sadd.s32 1, %s18
    $region7: #{tpu_custom_call.1} parent=1 // loop_footer_branch
      %17 = sbr.rel target = $region3
    $region8: #{tpu_custom_call.1} parent=1 // loop_exit
      _
    %608 = vsyncpa [#allocation5], 1
    %s609 = scalar_lea.sflag [#allocation5], 1
    %610 = vsyncpa %s609, 1
    %611 = vsyncpa [#allocation6], 1
    %s612 = scalar_lea.sflag [#allocation6], 1
    %613 = vsyncpa %s612, 1

</llo_original>
